<compile_context>
chip_gen: v5e
topology: v5e:2x2
jax: 0.10.0
libtpu: 0.0.40
codegen_flags: <defaults>
</compile_context>

<pallas_src>
import functools

import jax
import jax.numpy as jnp
from jax.experimental import pallas as pl
from jax.experimental.pallas import tpu as pltpu


def _cam_kernel(x_ref, w1_ref, w2_ref, o_ref, sum_ref, max_ref,
                *, s_total, spatial_tile, needs_mask):
    # x_ref block: (1, C, TS); w1: (Hd, C); w2: (C, Hd); o_ref block: (1, C, 1)
    # sum_ref/max_ref: (C, 1) fp32 running accumulators (persist across grid).
    s = pl.program_id(1)

    @pl.when(s == 0)
    def _init():
        sum_ref[...] = jnp.zeros_like(sum_ref)
        max_ref[...] = jnp.full_like(max_ref, -jnp.inf)

    x = x_ref[0].astype(jnp.float32)                       # (C, TS)
    if needs_mask:
        # Only emitted when S % TS != 0: mask padded lanes of the last tile.
        lane = jax.lax.broadcasted_iota(jnp.int32, x.shape, dimension=1)
        valid = (s * spatial_tile + lane) < s_total
        x_sum = jnp.where(valid, x, 0.0)
        x_max = jnp.where(valid, x, -jnp.inf)
    else:
        x_sum = x
        x_max = x

    sum_ref[...] += jnp.sum(x_sum, axis=-1, keepdims=True)                 # (C, 1)
    max_ref[...] = jnp.maximum(max_ref[...],
                               jnp.max(x_max, axis=-1, keepdims=True))     # (C, 1)

    @pl.when(s == pl.num_programs(1) - 1)
    def _finalize():
        avg = sum_ref[...] * jnp.float32(1.0 / s_total)                    # (C, 1)
        pooled = jnp.concatenate([avg, max_ref[...]], axis=-1)             # (C, 2)
        w1 = w1_ref[...].astype(jnp.float32)                               # (Hd, C)
        w2 = w2_ref[...].astype(jnp.float32)                               # (C, Hd)
        hidden = jnp.maximum(
            jnp.dot(w1, pooled, preferred_element_type=jnp.float32), 0.0)  # (Hd, 2)
        both = jnp.dot(w2, hidden, preferred_element_type=jnp.float32)     # (C, 2)
        attn = jax.nn.sigmoid(both[:, 0:1] + both[:, 1:2])                 # (C, 1)
        o_ref[0] = attn.astype(o_ref.dtype)


def _choose_spatial_tile(C, S, itemsize, max_tile=None,
                         input_vmem_budget=16 * 1024 * 1024):
    """Largest lane tile (multiple of 128) whose double-buffered input block
    fits the budget; falls back to the full spatial extent when it fits."""
    ts = (input_vmem_budget // (2 * C * itemsize)) // 128 * 128
    ts = max(ts, 128)
    if max_tile is not None:
        ts = min(ts, max(128, (max_tile // 128) * 128))
    if ts >= S:
        return S          # single full-extent block is always layout-legal
    return ts             # multiple of 128; ragged tail handled by masking


def channel_attention_forward(x, w1, w2, *, max_spatial_tile=None):
    """x: (N, C, D, H, W). w1: (C//r, C), w2: (C, C//r).
    Returns (N, C, 1, 1, 1) channel-attention weights (same dtype as x)."""
    N, C, D, H, W = x.shape
    S = D * H * W
    Hd = w1.shape[0]

    # Keep native dtype: no fp32 upcast copy of the whole tensor in HBM.
    x_flat = x.reshape(N, C, S)
    itemsize = jnp.dtype(x.dtype).itemsize

    ts = _choose_spatial_tile(C, S, itemsize, max_tile=max_spatial_tile)
    num_s = pl.cdiv(S, ts)
    needs_mask = (S % ts) != 0

    kernel = functools.partial(
        _cam_kernel, s_total=S, spatial_tile=ts, needs_mask=needs_mask)

    out = pl.pallas_call(
        kernel,
        out_shape=jax.ShapeDtypeStruct((N, C, 1), x.dtype),
        grid_spec=pltpu.PrefetchScalarGridSpec(
            num_scalar_prefetch=0,
            grid=(N, num_s),
            in_specs=[
                pl.BlockSpec((1, C, ts), lambda n, s: (n, 0, s)),   # spatial-tiled input
                pl.BlockSpec((Hd, C), lambda n, s: (0, 0)),         # w1 (resident)
                pl.BlockSpec((C, Hd), lambda n, s: (0, 0)),         # w2 (resident)
            ],
            out_specs=pl.BlockSpec((1, C, 1), lambda n, s: (n, 0, 0)),
            scratch_shapes=[
                pltpu.VMEM((C, 1), jnp.float32),   # running sum
                pltpu.VMEM((C, 1), jnp.float32),   # running max
            ],
        ),
        compiler_params=pltpu.CompilerParams(
            dimension_semantics=("parallel", "arbitrary"),
            vmem_limit_bytes=32 * 1024 * 1024,
        ),
    )(x_flat, w1, w2)

    return out.reshape(N, C, 1, 1, 1)


def reference_forward(x, w1, w2):
    """Pure-JAX reference matching the PyTorch ChannelAttentionModule."""
    xf = x.astype(jnp.float32)
    avg = jnp.mean(xf, axis=(2, 3, 4))                     # (N, C)
    mx = jnp.max(xf, axis=(2, 3, 4))                       # (N, C)

    def mlp(p):                                            # p: (N, C)
        h = jnp.maximum(p @ w1.T, 0.0)                     # (N, Hd)
        return h @ w2.T                                    # (N, C)

    out = jax.nn.sigmoid(mlp(avg) + mlp(mx))               # (N, C)
    return out[:, :, None, None, None].astype(x.dtype)


if __name__ == "__main__":
    # Small shapes consistent with the module: N=2, C=8 channels, ratio=4.
    # Spatial volume D=4, H=9, W=9 -> S=324, so forcing TS=128 exercises the
    # multi-tile reduction path AND the ragged last-tile masking.
    N, C, ratio = 2, 8, 4
    D, H, W = 4, 9, 9
    Hd = C // ratio

    key = jax.random.PRNGKey(0)
    kx, k1, k2 = jax.random.split(key, 3)

    x = jax.random.normal(kx, (N, C, D, H, W), dtype=jnp.float32)
    # Deterministic synthetic weights (kaiming-ish scale), bias=False convs.
    w1 = jax.random.normal(k1, (Hd, C), dtype=jnp.float32) * (2.0 / C) ** 0.5
    w2 = jax.random.normal(k2, (C, Hd), dtype=jnp.float32) * (2.0 / Hd) ** 0.5

    # Tiled path: 3 spatial chunks of 128 lanes, last chunk masked (324 = 2*128 + 68).
    out_tiled = jax.block_until_ready(
        channel_attention_forward(x, w1, w2, max_spatial_tile=128))

    # Auto-sized path: whole spatial extent fits one block at these shapes.
    out_auto = jax.block_until_ready(channel_attention_forward(x, w1, w2))

    ref = reference_forward(x, w1, w2)
    assert out_tiled.shape == (N, C, 1, 1, 1)
    assert jnp.allclose(out_tiled, ref, atol=1e-5, rtol=1e-5), "tiled mismatch vs reference"
    assert jnp.allclose(out_auto, ref, atol=1e-5, rtol=1e-5), "auto mismatch vs reference"

    print("KERNEL_OK")
</pallas_src>

<mosaic_0001>
module attributes {stable_mosaic.version = 11 : i64} {
  func.func @_cam_kernel(%arg0: i32, %arg1: i32, %arg2: memref<1x8x128xf32, #tpu.memory_space<vmem>>, %arg3: memref<2x8xf32, #tpu.memory_space<vmem>>, %arg4: memref<8x2xf32, #tpu.memory_space<vmem>>, %arg5: memref<1x8x1xf32, #tpu.memory_space<vmem>>, %arg6: memref<8x1xf32, #tpu.memory_space<vmem>>, %arg7: memref<8x1xf32, #tpu.memory_space<vmem>>) attributes {dimension_semantics = [#tpu.dimension_semantics<parallel>, #tpu.dimension_semantics<arbitrary>], iteration_bounds = array<i64: 2, 3>, scalar_prefetch = 0 : i64, scratch_operands = 2 : i64, tpu.core_type = #tpu.core_type<tc>, window_params = [{transform_indices = @transform_0, window_bounds = array<i64: 1, 8, 128>}, {pipeline_mode = #tpu.pipeline_mode<synchronous>, transform_indices = @transform_1, window_bounds = array<i64: 2, 8>}, {pipeline_mode = #tpu.pipeline_mode<synchronous>, transform_indices = @transform_2, window_bounds = array<i64: 8, 2>}, {transform_indices = @transform_3, window_bounds = array<i64: 1, 8, 1>}]} {
    %c0_i32 = arith.constant 0 : i32
    %0 = arith.cmpi eq, %arg1, %c0_i32 : i32
    %1 = arith.extui %0 : i1 to i32
    %c0_i32_0 = arith.constant 0 : i32
    %2 = arith.cmpi ne, %1, %c0_i32_0 : i32
    scf.if %2 {
      %cst_15 = arith.constant 0.000000e+00 : f32
      %28 = vector.broadcast %cst_15 : f32 to vector<8x1xf32>
      %c0_16 = arith.constant 0 : index
      %c0_17 = arith.constant 0 : index
      %29 = vector.load %arg6[%c0_16, %c0_17] : memref<8x1xf32, #tpu.memory_space<vmem>>, vector<8x1xf32>
      tpu.vector_store %arg6[%c0_16, %c0_17], %28 {strides = array<i32>} : memref<8x1xf32, #tpu.memory_space<vmem>>, vector<8x1xf32>,
      %cst_18 = arith.constant 0xFF800000 : f32
      %30 = vector.broadcast %cst_18 : f32 to vector<8x1xf32>
      %c0_19 = arith.constant 0 : index
      %c0_20 = arith.constant 0 : index
      %31 = vector.load %arg7[%c0_19, %c0_20] : memref<8x1xf32, #tpu.memory_space<vmem>>, vector<8x1xf32>
      tpu.vector_store %arg7[%c0_19, %c0_20], %30 {strides = array<i32>} : memref<8x1xf32, #tpu.memory_space<vmem>>, vector<8x1xf32>,
    } else {
    }
    %c0 = arith.constant 0 : index
    %c0_1 = arith.constant 0 : index
    %c0_2 = arith.constant 0 : index
    %3 = vector.load %arg2[%c0, %c0_1, %c0_2] : memref<1x8x128xf32, #tpu.memory_space<vmem>>, vector<1x8x128xf32>
    %4 = vector.shape_cast %3 : vector<1x8x128xf32> to vector<8x128xf32>
    %5 = tpu.iota {dimensions = array<i32: 1>} : vector<8x128xi32>
    %c128_i32 = arith.constant 128 : i32
    %6 = arith.muli %arg1, %c128_i32 : i32
    %7 = vector.broadcast %6 : i32 to vector<8x128xi32>
    %8 = arith.addi %7, %5 : vector<8x128xi32>
    %c324_i32 = arith.constant 324 : i32
    %9 = vector.broadcast %c324_i32 : i32 to vector<8x128xi32>
    %10 = arith.cmpi slt, %8, %9 : vector<8x128xi32>
    %cst = arith.constant 0.000000e+00 : f32
    %11 = vector.broadcast %cst : f32 to vector<8x128xf32>
    %12 = arith.select %10, %4, %11 : vector<8x128xi1>, vector<8x128xf32>
    %cst_3 = arith.constant 0xFF800000 : f32
    %13 = vector.broadcast %cst_3 : f32 to vector<8x128xf32>
    %14 = arith.select %10, %4, %13 : vector<8x128xi1>, vector<8x128xf32>
    %c0_4 = arith.constant 0 : index
    %c0_5 = arith.constant 0 : index
    %15 = vector.load %arg6[%c0_4, %c0_5] : memref<8x1xf32, #tpu.memory_space<vmem>>, vector<8x1xf32>
    %cst_6 = arith.constant dense<0.000000e+00> : vector<8xf32>
    %16 = vector.multi_reduction <add>, %12, %cst_6 [1] : vector<8x128xf32> to vector<8xf32>
    %17 = vector.shape_cast %16 : vector<8xf32> to vector<8x1xf32>
    %18 = arith.addf %15, %17 : vector<8x1xf32>
    %c0_7 = arith.constant 0 : index
    %c0_8 = arith.constant 0 : index
    %19 = vector.load %arg6[%c0_7, %c0_8] : memref<8x1xf32, #tpu.memory_space<vmem>>, vector<8x1xf32>
    tpu.vector_store %arg6[%c0_7, %c0_8], %18 {strides = array<i32>} : memref<8x1xf32, #tpu.memory_space<vmem>>, vector<8x1xf32>,
    %c0_9 = arith.constant 0 : index
    %c0_10 = arith.constant 0 : index
    %20 = vector.load %arg7[%c0_9, %c0_10] : memref<8x1xf32, #tpu.memory_space<vmem>>, vector<8x1xf32>
    %cst_11 = arith.constant dense<0xFF800000> : vector<8xf32>
    %21 = vector.multi_reduction <maximumf>, %14, %cst_11 [1] : vector<8x128xf32> to vector<8xf32>
    %22 = vector.shape_cast %21 : vector<8xf32> to vector<8x1xf32>
    %23 = arith.maximumf %20, %22 : vector<8x1xf32>
    %c0_12 = arith.constant 0 : index
    %c0_13 = arith.constant 0 : index
    %24 = vector.load %arg7[%c0_12, %c0_13] : memref<8x1xf32, #tpu.memory_space<vmem>>, vector<8x1xf32>
    tpu.vector_store %arg7[%c0_12, %c0_13], %23 {strides = array<i32>} : memref<8x1xf32, #tpu.memory_space<vmem>>, vector<8x1xf32>,
    %c2_i32 = arith.constant 2 : i32
    %25 = arith.cmpi eq, %arg1, %c2_i32 : i32
    %26 = arith.extui %25 : i1 to i32
    %c0_i32_14 = arith.constant 0 : i32
    %27 = arith.cmpi ne, %26, %c0_i32_14 : i32
    scf.if %27 {
      %c0_15 = arith.constant 0 : index
      %c0_16 = arith.constant 0 : index
      %28 = vector.load %arg6[%c0_15, %c0_16] : memref<8x1xf32, #tpu.memory_space<vmem>>, vector<8x1xf32>
      %cst_17 = arith.constant 0.00308641978 : f32
      %29 = vector.broadcast %cst_17 : f32 to vector<8x1xf32>
      %30 = arith.mulf %28, %29 : vector<8x1xf32>
      %c0_18 = arith.constant 0 : index
      %c0_19 = arith.constant 0 : index
      %31 = vector.load %arg7[%c0_18, %c0_19] : memref<8x1xf32, #tpu.memory_space<vmem>>, vector<8x1xf32>
      %32 = tpu.concatenate %30, %31 in 1 : vector<8x1xf32>, vector<8x1xf32> -> vector<8x2xf32>
      %c0_20 = arith.constant 0 : index
      %c0_21 = arith.constant 0 : index
      %33 = vector.load %arg3[%c0_20, %c0_21] : memref<2x8xf32, #tpu.memory_space<vmem>>, vector<2x8xf32>
      %c0_22 = arith.constant 0 : index
      %c0_23 = arith.constant 0 : index
      %34 = vector.load %arg4[%c0_22, %c0_23] : memref<8x2xf32, #tpu.memory_space<vmem>>, vector<8x2xf32>
      %cst_24 = arith.constant dense<0.000000e+00> : vector<2x2xf32>
      %35 = tpu.matmul %33, %32, %cst_24 {dimension_numbers = #tpu.dot_dimension_numbers<[1], [0], [0], [1], [0, 0, 1, 1], [], []>} : vector<2x8xf32>, vector<8x2xf32>, vector<2x2xf32> -> vector<2x2xf32>
      %cst_25 = arith.constant 0.000000e+00 : f32
      %36 = vector.broadcast %cst_25 : f32 to vector<2x2xf32>
      %37 = arith.maximumf %35, %36 : vector<2x2xf32>
      %cst_26 = arith.constant dense<0.000000e+00> : vector<8x2xf32>
      %38 = tpu.matmul %34, %37, %cst_26 {dimension_numbers = #tpu.dot_dimension_numbers<[1], [0], [0], [1], [0, 0, 1, 1], [], []>} : vector<8x2xf32>, vector<2x2xf32>, vector<8x2xf32> -> vector<8x2xf32>
      %39 = vector.extract_strided_slice %38 {offsets = [0, 0], sizes = [8, 1], strides = [1, 1]} : vector<8x2xf32> to vector<8x1xf32>
      %40 = vector.extract_strided_slice %38 {offsets = [0, 1], sizes = [8, 1], strides = [1, 1]} : vector<8x2xf32> to vector<8x1xf32>
      %41 = arith.addf %39, %40 : vector<8x1xf32>
      %42 = arith.negf %41 : vector<8x1xf32>
      %43 = math.exp %42 : vector<8x1xf32>
      %cst_27 = arith.constant 1.000000e+00 : f32
      %44 = vector.broadcast %cst_27 : f32 to vector<8x1xf32>
      %45 = arith.addf %44, %43 : vector<8x1xf32>
      %46 = arith.divf %44, %45 : vector<8x1xf32>
      %c0_28 = arith.constant 0 : index
      %c0_29 = arith.constant 0 : index
      %c0_30 = arith.constant 0 : index
      %47 = vector.load %arg5[%c0_28, %c0_29, %c0_30] : memref<1x8x1xf32, #tpu.memory_space<vmem>>, vector<1x8x1xf32>
      %48 = vector.shape_cast %47 : vector<1x8x1xf32> to vector<8x1xf32>
      %49 = vector.shape_cast %46 : vector<8x1xf32> to vector<1x8x1xf32>
      tpu.vector_store %arg5[%c0_28, %c0_29, %c0_30], %49 {strides = array<i32>} : memref<1x8x1xf32, #tpu.memory_space<vmem>>, vector<1x8x1xf32>,
    } else {
    }
    return
  }
  func.func @transform_0(%arg0: i32, %arg1: i32) -> (i32, i32, i32) {
    %c0_i32 = arith.constant 0 : i32
    %c0_i32_0 = arith.constant 0 : i32
    return %arg0, %c0_i32, %arg1 : i32, i32, i32
  }
  func.func @transform_1(%arg0: i32, %arg1: i32) -> (i32, i32) {
    %c0_i32 = arith.constant 0 : i32
    %c0_i32_0 = arith.constant 0 : i32
    %c0_i32_1 = arith.constant 0 : i32
    return %c0_i32, %c0_i32_0 : i32, i32
  }
  func.func @transform_2(%arg0: i32, %arg1: i32) -> (i32, i32) {
    %c0_i32 = arith.constant 0 : i32
    %c0_i32_0 = arith.constant 0 : i32
    %c0_i32_1 = arith.constant 0 : i32
    return %c0_i32, %c0_i32_0 : i32, i32
  }
  func.func @transform_3(%arg0: i32, %arg1: i32) -> (i32, i32, i32) {
    %c0_i32 = arith.constant 0 : i32
    %c0_i32_0 = arith.constant 0 : i32
    %c0_i32_1 = arith.constant 0 : i32
    return %arg0, %c0_i32, %c0_i32_0 : i32, i32, i32
  }
}

</mosaic_0001>

<llo_original>
// kernel: tpu_custom_call.1
$region0: #{tpu_custom_call.1}
  #allocation0 [shape = 'u32[]', space=smem, size = 0x4, offset = 0x4, fixed_abs, tag = 'smem constant byte address 0x4 - core index']
  #allocation1 [shape = 'u32[72,128]{1,0:T(1,128)}', space=vmem, size = 0x9000, scoped, tag = 'internal scratch']
  #allocation2 [shape = 'f32[8,1]{1,0:T(8,128)}', space=vmem, size = 0x1000, scoped, tag = 'scratch operand']
  #allocation3 [shape = 'f32[8,1]{1,0:T(8,128)}', space=vmem, size = 0x1000, scoped, tag = 'scratch operand']
  %s0 = inlined_call_operand.hbm [shape: f32[2,8,324], index: 0, kind: input, shape index: {}]
  %s1 = inlined_call_operand.vmem [shape: f32[2,8], index: 1, kind: input, shape index: {}]
  %s2 = inlined_call_operand.vmem [shape: f32[8,2], index: 2, kind: input, shape index: {}]
  %s3 = inlined_call_operand.vmem [shape: f32[2,8,1], index: 3, kind: output, shape index: {}]
  %s4 = sld [smem:[#allocation0]]
  $region57: #{tpu_custom_call.1} parent=0
    _
  %s6 = ssub.s32 1, %s4
  %s7 = scalar_select 0, %s6, %s4
  $region1: #{tpu_custom_call.1} parent=0
    #allocation4 [shape = 'u8[8192]{0}', space=vmem, size = 0x2000, scoped, tag = 'input window, operand 0']
    #allocation5 [shape = 's32[2]{0}', space=sflag, size = 0x8, scoped, tag = 'scoped memory for tpu_custom_call.1']
    %8 = vsyncpa [#allocation5], 0
    %s9 = scalar_lea.sflag [#allocation5], 1
    %10 = vsyncpa %s9, 0
    loop: start=0, step=1, limit=8
    $region2: #{tpu_custom_call.1} parent=1 // loop_pre_header
      _
    $region3: #{tpu_custom_call.1} parent=1 // loop_header
      %s12 = sphi 0, %s16
      %p13 = scmp.ge.s32.totalorder %s12, 8
      %s19 = sphi 0, %s31
      %s20 = sphi 0, %s27
      %s21 = sphi 0, %s19
      %s22 = sphi 0, %s20
      %s23 = sphi 0, %s21
      %s24 = sphi 0, %s22
      %s36 = sphi 0, %s38
      %s39 = sphi 0, %s36
      %s40 = sphi 0, %s39
      %s56 = sphi 0, %s40
      %s60 = sphi 0, %s60
      %s62 = sphi 0, %s60
      %s63 = sphi 0, %s62
      %s77 = sphi 0, %s63
      %s81 = sphi 0, %s81
      %s83 = sphi 0, %s81
      %s84 = sphi 0, %s83
      %s98 = sphi 0, %s84
      %s104 = sphi 0, %s106
      %s107 = sphi 0, %s104
      %s108 = sphi 0, %s107
      %s124 = sphi 0, %s108
    $region4: #{tpu_custom_call.1} parent=1 // loop_header_branch
      %15 = sbr.rel (%p13) target = $region8
    $region5: #{tpu_custom_call.1} parent=1 // loop_body
      %s17 = ssub.s32 %s12, 1
      %s18 = ssub.s32 %s12, 2
      %s25 = sadd.s32 1, %s20
      %p26 = scmp.ge.s32.totalorder %s25, 3
      %s27 = scalar_select %p26, 0, %s25
      %s28 = sadd.s32 1, %s19
      %s29 = scalar_select %p26, %s28, %s19
      %p30 = scmp.ge.s32.totalorder %s29, 2
      %s31 = scalar_select %p30, 0, %s29
      %s32 = ssub.s32 %s19, %s31
      %s33 = ssub.s32 %s20, %s27
      %s34 = sor.u32 %s32, %s33
      %p35 = scmp.eq.s32.totalorder %s34, 0
      %s37 = sadd.s32 %s36, 1
      %s38 = scalar_select %p35, %s36, %s37
      %p41 = pneg %p35
      %p42 = scmp.eq.s32.totalorder %s12, 5
      %p43 = por %p41, %p42
      %p44 = scmp.ne.s32.totalorder %s36, %s39
      %p45 = scmp.eq.s32.totalorder %s12, 0
      %p46 = por %p44, %p45
      %p47 = scmp.ne.s32.totalorder %s36, %s39
      %p48 = scmp.eq.s32.totalorder %s17, 5
      %p49 = por %p47, %p48
      %p50 = scmp.ne.s32.totalorder %s39, %s40
      %p51 = scmp.eq.s32.totalorder %s17, 0
      %p52 = por %p50, %p51
      %p53 = scmp.ne.s32.totalorder %s39, %s40
      %p54 = scmp.eq.s32.totalorder %s18, 5
      %p55 = por %p53, %p54
      %p57 = scmp.ne.s32.totalorder %s40, %s56
      %p58 = scmp.eq.s32.totalorder %s18, 0
      %p59 = por %p57, %p58
      %s61 = sadd.s32 %s60, 1
      %p64 = scmp.eq.s32.totalorder %s12, 5
      %p65 = scmp.ne.s32.totalorder %s60, %s62
      %p66 = scmp.eq.s32.totalorder %s12, 0
      %p67 = por %p65, %p66
      %p68 = scmp.ne.s32.totalorder %s60, %s62
      %p69 = scmp.eq.s32.totalorder %s17, 5
      %p70 = por %p68, %p69
      %p71 = scmp.ne.s32.totalorder %s62, %s63
      %p72 = scmp.eq.s32.totalorder %s17, 0
      %p73 = por %p71, %p72
      %p74 = scmp.ne.s32.totalorder %s62, %s63
      %p75 = scmp.eq.s32.totalorder %s18, 5
      %p76 = por %p74, %p75
      %p78 = scmp.ne.s32.totalorder %s63, %s77
      %p79 = scmp.eq.s32.totalorder %s18, 0
      %p80 = por %p78, %p79
      %s82 = sadd.s32 %s81, 1
      %p85 = scmp.eq.s32.totalorder %s12, 5
      %p86 = scmp.ne.s32.totalorder %s81, %s83
      %p87 = scmp.eq.s32.totalorder %s12, 0
      %p88 = por %p86, %p87
      %p89 = scmp.ne.s32.totalorder %s81, %s83
      %p90 = scmp.eq.s32.totalorder %s17, 5
      %p91 = por %p89, %p90
      %p92 = scmp.ne.s32.totalorder %s83, %s84
      %p93 = scmp.eq.s32.totalorder %s17, 0
      %p94 = por %p92, %p93
      %p95 = scmp.ne.s32.totalorder %s83, %s84
      %p96 = scmp.eq.s32.totalorder %s18, 5
      %p97 = por %p95, %p96
      %p99 = scmp.ne.s32.totalorder %s84, %s98
      %p100 = scmp.eq.s32.totalorder %s18, 0
      %p101 = por %p99, %p100
      %s102 = ssub.s32 %s19, %s31
      %p103 = scmp.eq.s32.totalorder %s102, 0
      %s105 = sadd.s32 %s104, 1
      %s106 = scalar_select %p103, %s104, %s105
      %p109 = pneg %p103
      %p110 = scmp.eq.s32.totalorder %s12, 5
      %p111 = por %p109, %p110
      %p112 = scmp.ne.s32.totalorder %s104, %s107
      %p113 = scmp.eq.s32.totalorder %s12, 0
      %p114 = por %p112, %p113
      %p115 = scmp.ne.s32.totalorder %s104, %s107
      %p116 = scmp.eq.s32.totalorder %s17, 5
      %p117 = por %p115, %p116
      %p118 = scmp.ne.s32.totalorder %s107, %s108
      %p119 = scmp.eq.s32.totalorder %s17, 0
      %p120 = por %p118, %p119
      %p121 = scmp.ne.s32.totalorder %s107, %s108
      %p122 = scmp.eq.s32.totalorder %s18, 5
      %p123 = por %p121, %p122
      %p125 = scmp.ne.s32.totalorder %s108, %s124
      %p126 = scmp.eq.s32.totalorder %s18, 0
      %p127 = por %p125, %p126
      %p128 = scmp.le.s32.totalorder 1, %s12
      %p129 = scmp.lt.s32.totalorder %s12, 7
      %p130 = pnand %p128, %p129
      %p131 = pneg %p130
      // Predicated region
      $region9: #{tpu_custom_call.1} parent=5 // pred_check
        _
      $region10: #{tpu_custom_call.1} parent=5 // pred_check_branch
        %133 = sbr.rel (%p130) target = $region12
      $region11: #{tpu_custom_call.1} parent=5 // pred_region
        %s134 = ssub.s32 %s12, 1
        // Predicated region
        $region13: #{tpu_custom_call.1} parent=11 // pred_check
          %p135 = pneg %p73
        $region14: #{tpu_custom_call.1} parent=11 // pred_check_branch
          %137 = sbr.rel (%p135) target = $region16
        $region15: #{tpu_custom_call.1} parent=11 // pred_region
          _
        $region16: #{tpu_custom_call.1} parent=11 // pred_fallthru
          _
        // Predicated region
        $region17: #{tpu_custom_call.1} parent=11 // pred_check
          %p138 = pneg %p94
        $region18: #{tpu_custom_call.1} parent=11 // pred_check_branch
          %140 = sbr.rel (%p138) target = $region20
        $region19: #{tpu_custom_call.1} parent=11 // pred_region
          _
        $region20: #{tpu_custom_call.1} parent=11 // pred_fallthru
          _
      $region12: #{tpu_custom_call.1} parent=5 // pred_fallthru
        _
      %p141 = scmp.lt.s32.totalorder %s12, 6
      // Predicated region
      $region21: #{tpu_custom_call.1} parent=5 // pred_check
        %p142 = pneg %p141
      $region22: #{tpu_custom_call.1} parent=5 // pred_check_branch
        %144 = sbr.rel (%p142) target = $region24
      $region23: #{tpu_custom_call.1} parent=5 // pred_region
        // Predicated region
        $region25: #{tpu_custom_call.1} parent=23 // pred_check
          %p145 = pneg %p46
        $region26: #{tpu_custom_call.1} parent=23 // pred_check_branch
          %147 = sbr.rel (%p145) target = $region28
        $region27: #{tpu_custom_call.1} parent=23 // pred_region
          %s148 = sand.u32 %s36, 1
          %s149 = scalar_lea.sflag [#allocation5], %s148
          %s150 = sand.u32 %s36, 1
          %s151 = smul.addr %s150, 8
          %s152 = scalar_lea.vmem [#allocation4], %s151
          %154 = vsyncadd %s149, 0
          %s155 = smul.addr %s19, 3
          %s156 = sadd.s32 %s20, %s155
          %s157 = smul.addr %s156, 8
          %s158 = scalar_lea.hbm %s0, %s157
          %s160 = sshll.u32 %s158, 4
          %s161 = int_to_ptr.hbm [resolvable:$true] %s160
          %s162 = sshll.u32 %s152, 4
          %s163 = int_to_ptr.vmem [resolvable:$true] %s162
          %165 = dma.hbm_to_vmem [thread:$0]  %s161, 128, %s163, %s149
        $region28: #{tpu_custom_call.1} parent=23 // pred_fallthru
          _
      $region24: #{tpu_custom_call.1} parent=5 // pred_fallthru
        _
      %p166 = scmp.le.s32.totalorder 1, %s12
      %p167 = scmp.lt.s32.totalorder %s12, 7
      %p168 = pnand %p166, %p167
      %p169 = pneg %p168
      // Predicated region
      $region29: #{tpu_custom_call.1} parent=5 // pred_check
        _
      $region30: #{tpu_custom_call.1} parent=5 // pred_check_branch
        %171 = sbr.rel (%p168) target = $region32
      $region31: #{tpu_custom_call.1} parent=5 // pred_region
        %s172 = ssub.s32 %s12, 1
        %s173 = sand.u32 %s39, 1
        %s174 = scalar_lea.sflag [#allocation5], %s173
        %s175 = sand.u32 %s39, 1
        %s176 = smul.addr %s175, 8
        %s177 = scalar_lea.vmem [#allocation4], %s176
        // Predicated region
        $region33: #{tpu_custom_call.1} parent=31 // pred_check
          %p178 = pneg %p52
        $region34: #{tpu_custom_call.1} parent=31 // pred_check_branch
          %180 = sbr.rel (%p178) target = $region36
        $region35: #{tpu_custom_call.1} parent=31 // pred_region
          %182 = dma.done %s174, 128
        $region36: #{tpu_custom_call.1} parent=31 // pred_fallthru
          _
        %s183 = sand.u32 %s39, 1
        %s184 = scalar_lea.sflag [#allocation5], %s183
        %s185 = sand.u32 %s39, 1
        %s186 = smul.addr %s185, 8
        %s187 = scalar_lea.vmem [#allocation4], %s186
        %p188 = pneg %p52
        %p189 = pneg %p49
        %p190 = pneg %p73
        %p191 = pneg %p70
        %p192 = pneg %p94
        %p193 = pneg %p91
        %p194 = pneg %p120
        %p195 = pneg %p117
        %p196 = scmp.lt.s32.totalorder %s21, 1
        %s197 = scalar_select %p196, %s21, 1
        %s198 = smul.addr %s197, 8
        %s199 = scalar_lea.vmem %s3, %s198
        %p200 = scmp.lt.s32.totalorder %s21, 1
        %s201 = scalar_select %p200, %s21, 1
        %s202 = smul.addr %s201, 8
        %s203 = scalar_lea.vmem %s3, %s202
        %p204 = scmp.eq.s32.totalorder %s22, 0
        // Predicated region
        $region37: #{tpu_custom_call.1} parent=31 // pred_check
          %p205 = pneg %p204
        $region38: #{tpu_custom_call.1} parent=31 // pred_check_branch
          %207 = sbr.rel (%p205) target = $region40
        $region39: #{tpu_custom_call.1} parent=31 // pred_region
          %vm208 = vcmask 7168
          %209 = vst.msk [vmem:[#allocation2] sm:$0xff] %vm208, 0.0
          %210 = vst.msk [vmem:[#allocation3] sm:$0xff] %vm208, -inf
        $region40: #{tpu_custom_call.1} parent=31 // pred_fallthru
          _
        %v211 = vld [vmem:[%s177] sm:$0xff]
        %v212 = vlaneseq
        %v213 = vand.u32 %v212, 127
        %s214 = smul.u32 %s22, 128
        %v215 = vstv %s214
        %v216 = vadd.s32 %v215, %v213
        %vm217 = vcmp.lt.s32.totalorder %v216, 324
        %v218 = vsel %vm217, %v211, 0.0
        %v219 = vsel %vm217, %v211, -inf
        %v220 = vld [vmem:[#allocation2] sm:$0xff]
        %221 = vadd.xlane.f32.xlu0 %v218
        %v222 = vpop.xlane.xlu0 %221
        %v223 = vadd.f32 %v220, %v222
        %vm224 = vcmask 7168
        %225 = vst.msk [vmem:[#allocation2] sm:$0xff] %vm224, %v223
        %v226 = vld [vmem:[#allocation3] sm:$0xff]
        %227 = vmax.xlane.f32.xlu0 %v219
        %v228 = vpop.xlane.xlu0 %227
        %v229 = vmax.f32 %v226, %v228
        %230 = vst.msk [vmem:[#allocation3] sm:$0xff] %vm224, %v229
        %p231 = scmp.eq.s32.totalorder %s22, 2
        // Predicated region
        $region41: #{tpu_custom_call.1} parent=31 // pred_check
          %p232 = pneg %p231
        $region42: #{tpu_custom_call.1} parent=31 // pred_check_branch
          %234 = sbr.rel (%p232) target = $region44
        $region43: #{tpu_custom_call.1} parent=31 // pred_region
          %v235 = vld [vmem:[#allocation2] sm:$0xff]
          %v236 = vmul.f32 %v235, 0.0030864198
          %v237 = vld [vmem:[#allocation3] sm:$0xff]
          %239 = vrot.lane.b32.xlu0 %v237, 1
          %v240 = vpop.permute.xlu0 %239
          %v242 = vsel %vm224, %v236, %v240
          %v243 = vld [vmem:[%s1] sm:$0x3]
          %v244 = vld [vmem:[%s2] sm:$0xff]
          %vm245 = vcmask 64512
          %v247 = vsel %vm245, %v243, 0
          %249 = vmatpush.msra.mxu0 0.0
          %250 = vmatpush.msra.mxu0 0.0
          %251 = vmatpush.msra.mxu0 0.0
          %252 = vmatpush.msra.mxu0 0.0
          %253 = vmatpush.msra.mxu0 0.0
          %254 = vmatpush.msra.mxu0 0.0
          %255 = vmatpush.msra.mxu0 0.0
          %256 = vmatpush.msra.mxu0 0.0
          %257 = vmatpush.msra.mxu0 0.0
          %258 = vmatpush.msra.mxu0 0.0
          %259 = vmatpush.msra.mxu0 0.0
          %260 = vmatpush.msra.mxu0 0.0
          %261 = vmatpush.msra.mxu0 0.0
          %262 = vmatpush.msra.mxu0 0.0
          %263 = vmatpush.msra.mxu0 0.0
          %264 = vmatpush.msra.mxu0 %v242
          %265 = vmatmul.f32.gmra.mxu0 %v247
          %v266 = vpop.f32.mrf.mxu0
          %v267 = vadd.f32 0.0, %v266
          %268 = vdwg.mxu0
          %v269 = vmax.f32 %v267, 0.0
          %vm270 = vcmask 15360
          %v272 = vsel %vm270, %v244, 0
          %vm274 = vcmask 1041408
          %v276 = vsel %vm274, %v269, 0
          %278 = vmatpush.msra.mxu0 0.0
          %279 = vmatpush.msra.mxu0 0.0
          %280 = vmatpush.msra.mxu0 0.0
          %281 = vmatpush.msra.mxu0 0.0
          %282 = vmatpush.msra.mxu0 0.0
          %283 = vmatpush.msra.mxu0 0.0
          %284 = vmatpush.msra.mxu0 0.0
          %285 = vmatpush.msra.mxu0 0.0
          %286 = vmatpush.msra.mxu0 0.0
          %287 = vmatpush.msra.mxu0 0.0
          %288 = vmatpush.msra.mxu0 0.0
          %289 = vmatpush.msra.mxu0 0.0
          %290 = vmatpush.msra.mxu0 0.0
          %291 = vmatpush.msra.mxu0 0.0
          %292 = vmatpush.msra.mxu0 0.0
          %293 = vmatpush.msra.mxu0 %v276
          %294 = vmatmul.f32.gmra.mxu0 %v272
          %v295 = vpop.f32.mrf.mxu0
          %v296 = vadd.f32 0.0, %v295
          %297 = vdwg.mxu0
          %299 = vrot.lane.b32.xlu0 %v296, 127
          %v300 = vpop.permute.xlu0 %299
          %v302 = vadd.f32 %v296, %v300
          %v303 = vxor.u32 %v302, 2147483648
          %v304 = vmul.f32 %v303, 1.442695
          %v305 = vpow.pop %v304
          %v306 = vadd.f32 %v305, 1.0
          %v307 = vrcp.pop %v306
          %v308 = vmul.f32 %v306, %v307
          %v309 = vsub.f32 1.0, %v308
          %v310 = vmul.f32 %v307, %v309
          %v311 = vadd.f32 %v307, %v310
          %vm312 = vweird.f32 %v306
          %vm313 = vweird.f32 %v307
          %vm314 = vmor %vm312, %vm313
          %v315 = vsel %vm314, %v307, %v311
          %v316 = vand.u32 2147483647, %v306
          %vm317 = vcmp.eq.f32.partialorder %v316, 8.507059e+37
          %v318 = vand.u32 %v306, 2147483648
          %v319 = vor.u32 1.1754944e-38, %v318
          %v320 = vsel %vm317, %v319, %v315
          %v321 = vmul.f32 1.0, %v320
          %322 = vst.msk [vmem:[%s203] sm:$0xff] %vm224, %v321
        $region44: #{tpu_custom_call.1} parent=31 // pred_fallthru
          _
        %p323 = scmp.lt.s32.totalorder %s21, 1
        %s324 = scalar_select %p323, %s21, 1
        %s325 = smul.addr %s324, 8
        %s326 = scalar_lea.vmem %s3, %s325
        // Predicated region
        $region45: #{tpu_custom_call.1} parent=31 // pred_check
          %p327 = pneg %p117
        $region46: #{tpu_custom_call.1} parent=31 // pred_check_branch
          %329 = sbr.rel (%p327) target = $region48
        $region47: #{tpu_custom_call.1} parent=31 // pred_region
          _
        $region48: #{tpu_custom_call.1} parent=31 // pred_fallthru
          _
      $region32: #{tpu_custom_call.1} parent=5 // pred_fallthru
        _
      %p330 = scmp.le.s32.totalorder 2, %s12
      // Predicated region
      $region49: #{tpu_custom_call.1} parent=5 // pred_check
        %p331 = pneg %p330
      $region50: #{tpu_custom_call.1} parent=5 // pred_check_branch
        %333 = sbr.rel (%p331) target = $region52
      $region51: #{tpu_custom_call.1} parent=5 // pred_region
        %s334 = ssub.s32 %s12, 2
        // Predicated region
        $region53: #{tpu_custom_call.1} parent=51 // pred_check
          %p335 = pneg %p123
        $region54: #{tpu_custom_call.1} parent=51 // pred_check_branch
          %337 = sbr.rel (%p335) target = $region56
        $region55: #{tpu_custom_call.1} parent=51 // pred_region
          %p338 = scmp.lt.s32.totalorder %s23, 1
          %s339 = scalar_select %p338, %s23, 1
          %s340 = smul.addr %s339, 8
          %s341 = scalar_lea.vmem %s3, %s340
        $region56: #{tpu_custom_call.1} parent=51 // pred_fallthru
          _
      $region52: #{tpu_custom_call.1} parent=5 // pred_fallthru
        _
    $region6: #{tpu_custom_call.1} parent=1 // loop_footer
      %s16 = sadd.s32 1, %s12
    $region7: #{tpu_custom_call.1} parent=1 // loop_footer_branch
      %11 = sbr.rel target = $region3
    $region8: #{tpu_custom_call.1} parent=1 // loop_exit
      _
    %342 = vsyncpa [#allocation5], 1
    %s343 = scalar_lea.sflag [#allocation5], 1
    %344 = vsyncpa %s343, 1

</llo_original>
